<compile_context>
chip_gen: v5e
topology: v5e:2x2
jax: 0.10.0
libtpu: 0.0.40
codegen_flags: <defaults>
</compile_context>

<pallas_src>
import math
from functools import partial

import numpy as np
import jax
import jax.numpy as jnp
from jax.experimental import pallas as pl
from jax.experimental.pallas import tpu as pltpu

# ----------------------------- small synthetic config -----------------------------
VISION_HIDDEN = 128     # vision_config.hidden_size
TEXT_HIDDEN = 128       # text_config.hidden_size
VOCAB_SIZE = 40
IMAGE_TOKEN_INDEX = 32  # llava_config.image_token_index (kept < VOCAB_SIZE)
PAD_TOKEN_ID = 0
IMG = 16                # image H = W
PATCH = 4               # patch size -> 4x4 = 16 patches per image
NUM_PATCHES = (IMG // PATCH) ** 2
PATCH_DIM = 3 * PATCH * PATCH          # 48 (not lane aligned)
PATCH_DIM_PAD = 128                    # lane-padded contraction dim for patch embed
NUM_IMAGES = 2
BATCH = 2
SEQ = 8
MAX_ROW_TILE = 256      # cap the row tile so large M still pipelines / megacores


# ----------------------------------- kernel ---------------------------------------
def _fused_vision_projector_kernel(x_ref, wp_ref, bp_ref, w1_ref, b1_ref,
                                   w2_ref, b2_ref, o_ref):
    """Fused: patch-embed linear -> linear_1 -> exact GELU -> linear_2.

    All matmuls take bf16 operands and accumulate in f32 on the MXU; bias adds
    and the erf GELU are computed in f32 on the VPU/EUP.
    """
    x = x_ref[...].astype(jnp.bfloat16)
    # stand-in vision patch embedding (CLS token skipped: strategy == 'default')
    h = jnp.dot(x, wp_ref[...], preferred_element_type=jnp.float32) + bp_ref[...]
    # multi_modal_projector.linear_1
    h = jnp.dot(h.astype(jnp.bfloat16), w1_ref[...],
                preferred_element_type=jnp.float32) + b1_ref[...]
    # torch.nn.functional.gelu default (approximate='none') = exact erf GELU
    h = 0.5 * h * (1.0 + jax.lax.erf(h * (1.0 / math.sqrt(2.0))))
    # multi_modal_projector.linear_2
    y = jnp.dot(h.astype(jnp.bfloat16), w2_ref[...],
                preferred_element_type=jnp.float32) + b2_ref[...]
    o_ref[...] = y.astype(o_ref.dtype)


def pallas_fused_vision_projector(x_pad, wp_t, bp, w1_t, b1, w2_t, b2):
    """x_pad: (M, PATCH_DIM_PAD) f32, M a multiple of 8.
    Weights pre-transposed to (in, out), stored bf16; biases (1, D) f32."""
    M, K = x_pad.shape
    Dv = wp_t.shape[1]
    Dt = w1_t.shape[1]
    row_tile = min(M, MAX_ROW_TILE)
    # pad rows so the grid divides evenly (padded rows discarded by the caller)
    M_pad = pl.cdiv(M, row_tile) * row_tile
    if M_pad != M:
        x_pad = jnp.pad(x_pad, ((0, M_pad - M), (0, 0)))
    grid = (M_pad // row_tile,)
    out = pl.pallas_call(
        _fused_vision_projector_kernel,
        out_shape=jax.ShapeDtypeStruct((M_pad, Dt), jnp.float32),
        grid_spec=pl.GridSpec(
            grid=grid,
            in_specs=[
                pl.BlockSpec((row_tile, K), lambda i: (i, 0)),
                pl.BlockSpec((K, Dv), lambda i: (0, 0)),   # grid-invariant weights:
                pl.BlockSpec((1, Dv), lambda i: (0, 0)),   # stay resident in VMEM
                pl.BlockSpec((Dv, Dt), lambda i: (0, 0)),
                pl.BlockSpec((1, Dt), lambda i: (0, 0)),
                pl.BlockSpec((Dt, Dt), lambda i: (0, 0)),
                pl.BlockSpec((1, Dt), lambda i: (0, 0)),
            ],
            out_specs=pl.BlockSpec((row_tile, Dt), lambda i: (i, 0)),
        ),
        compiler_params=pltpu.CompilerParams(dimension_semantics=("parallel",)),
    )(x_pad, wp_t, bp, w1_t, b1, w2_t, b2)
    return out[:M] if M_pad != M else out


# ------------------------- device-side hot path (one jit) --------------------------
def patchify_nchw(pixel_values, patch):
    """NCHW -> (N, num_patches, C*patch*patch), row-major patch order."""
    n, c, h, w = pixel_values.shape
    x = pixel_values.reshape(n, c, h // patch, patch, w // patch, patch)
    x = jnp.transpose(x, (0, 2, 4, 1, 3, 5))
    return x.reshape(n, (h // patch) * (w // patch), c * patch * patch)


@partial(jax.jit, static_argnames=())
def _device_forward(params, input_ids, pixel_values):
    # language_model.get_embeddings()(input_ids)   (gather = glue)
    inputs_embeds = jnp.take(params["embed_table"], input_ids, axis=0)

    # TODO(synk): stand-in for the CLIP vision tower: patch-embedding linear fused
    # into the projector kernel, in place of the full transformer encoder /
    # hidden_states[-2].  The CLS token is never produced because
    # vision_feature_select_strategy == 'default' drops it anyway.
    patches = patchify_nchw(pixel_values, PATCH)                      # (N, P, 48)
    flat_patches = patches.reshape(-1, PATCH_DIM)                     # (N*P, 48)
    # lane-pad the contraction dim once (zero rows in the weight keep it exact)
    flat_patches = jnp.pad(flat_patches, ((0, 0), (0, PATCH_DIM_PAD - PATCH_DIM)))

    # fused: patch-embed + multi_modal_projector (single Pallas call, bf16 MXU)
    image_features = pallas_fused_vision_projector(
        flat_patches,
        params["w_patch_t"], params["b_patch"],
        params["w1_t"], params["b1"],
        params["w2_t"], params["b2"])
    image_features = image_features.reshape(NUM_IMAGES, NUM_PATCHES, TEXT_HIDDEN)
    return inputs_embeds, image_features


# --------------------------------- glue (numpy) ------------------------------------
def merge_input_ids_with_image_features(image_features, inputs_embeds, input_ids,
                                        attention_mask, pad_token_id, image_token_index):
    """Exact numpy transcription of LlavaModel._merge_input_ids_with_image_features."""
    image_features = np.asarray(image_features)
    inputs_embeds = np.asarray(inputs_embeds)
    input_ids = np.asarray(input_ids)
    attention_mask = np.asarray(attention_mask)

    num_images, num_image_patches, embed_dim = image_features.shape
    batch_size, sequence_length = input_ids.shape
    left_padding = not bool(np.sum(input_ids[:, -1] == pad_token_id))
    special_image_token_mask = input_ids == image_token_index
    num_special_image_tokens = special_image_token_mask.sum(-1)
    max_embed_dim = int(num_special_image_tokens.max() * (num_image_patches - 1) + sequence_length)
    batch_indices, non_image_indices = np.where(input_ids != image_token_index)
    new_token_positions = np.cumsum(special_image_token_mask * (num_image_patches - 1) + 1, -1) - 1
    nb_image_pad = max_embed_dim - 1 - new_token_positions[:, -1]
    if left_padding:
        new_token_positions = new_token_positions + nb_image_pad[:, None]
    text_to_overwrite = new_token_positions[batch_indices, non_image_indices]

    final_embedding = np.zeros((batch_size, max_embed_dim, embed_dim), dtype=inputs_embeds.dtype)
    final_attention_mask = np.zeros((batch_size, max_embed_dim), dtype=attention_mask.dtype)
    final_embedding[batch_indices, text_to_overwrite] = inputs_embeds[batch_indices, non_image_indices]
    final_attention_mask[batch_indices, text_to_overwrite] = attention_mask[batch_indices, non_image_indices]

    image_to_overwrite = np.all(final_embedding == 0, axis=-1)
    image_to_overwrite = np.logical_and(
        image_to_overwrite,
        np.cumsum(image_to_overwrite.astype(np.int64), -1) - 1 >= nb_image_pad[:, None])
    if int(image_to_overwrite.sum()) != num_images * num_image_patches:
        raise ValueError("The input provided to the model are wrong: image token / patch count mismatch.")
    final_embedding[image_to_overwrite] = image_features.reshape(-1, embed_dim)
    final_attention_mask = np.logical_or(final_attention_mask, image_to_overwrite).astype(np.int64)
    position_ids = np.cumsum(final_attention_mask, -1) - 1
    position_ids = np.where(final_attention_mask == 0, 1, position_ids)
    return final_embedding, final_attention_mask, position_ids


# ----------------------------------- forward ---------------------------------------
def llava_forward(params, input_ids, attention_mask, pixel_values):
    # one compiled executable for everything device-side before the merge
    inputs_embeds, image_features = _device_forward(params, input_ids, pixel_values)

    # Host-side index bookkeeping (data-dependent output length); the np.asarray
    # inside implicitly syncs — no explicit block_until_ready on the critical path.
    final_embedding, final_attention_mask, position_ids = merge_input_ids_with_image_features(
        image_features, inputs_embeds, input_ids, attention_mask,
        PAD_TOKEN_ID, IMAGE_TOKEN_INDEX)

    # TODO(synk): DecoderModel language_model forward (attention stack w/ KV cache) is
    # external; return the merged embeddings / mask / position ids it would consume.
    return final_embedding, final_attention_mask, position_ids


# ------------------------------------ main ------------------------------------------
if __name__ == "__main__":
    key = jax.random.PRNGKey(0)
    keys = jax.random.split(key, 10)
    scale = 0.02

    # patch-embed weight built at PATCH_DIM then zero-padded to the lane-padded K
    w_patch = scale * jax.random.normal(keys[1], (PATCH_DIM, VISION_HIDDEN), jnp.float32)
    w_patch_pad = jnp.pad(w_patch, ((0, PATCH_DIM_PAD - PATCH_DIM), (0, 0)))

    params = {
        "embed_table": scale * jax.random.normal(keys[0], (VOCAB_SIZE, TEXT_HIDDEN), jnp.float32),
        # weights stored pre-transposed to (in, out) and in bf16 for the MXU
        "w_patch_t":   w_patch_pad.astype(jnp.bfloat16),
        "b_patch":     scale * jax.random.normal(keys[2], (1, VISION_HIDDEN), jnp.float32),
        "w1_t":        (scale * jax.random.normal(keys[4], (VISION_HIDDEN, TEXT_HIDDEN), jnp.float32)).astype(jnp.bfloat16),
        "b1":          scale * jax.random.normal(keys[5], (1, TEXT_HIDDEN), jnp.float32),
        "w2_t":        (scale * jax.random.normal(keys[6], (TEXT_HIDDEN, TEXT_HIDDEN), jnp.float32)).astype(jnp.bfloat16),
        "b2":          scale * jax.random.normal(keys[7], (1, TEXT_HIDDEN), jnp.float32),
    }

    # input_ids: one image token per sequence, no pad at the end
    input_ids = np.array(
        [[5, 7, IMAGE_TOKEN_INDEX, 9, 11, 13, 15, 17],
         [3, IMAGE_TOKEN_INDEX, 2, 4, 6, 8, 10, 12]], dtype=np.int32)
    attention_mask = np.ones((BATCH, SEQ), dtype=np.int64)
    pixel_values = jax.random.normal(keys[8], (NUM_IMAGES, 3, IMG, IMG), jnp.float32)  # NCHW

    final_embedding, final_attention_mask, position_ids = llava_forward(
        params, jnp.asarray(input_ids), attention_mask, pixel_values)
    jax.block_until_ready((final_embedding, final_attention_mask, position_ids))

    # basic sanity: merged sequence length = num_patches - 1 + seq = 23
    assert final_embedding.shape == (BATCH, NUM_PATCHES - 1 + SEQ, TEXT_HIDDEN)
    assert final_attention_mask.shape == (BATCH, NUM_PATCHES - 1 + SEQ)
    assert position_ids.shape == (BATCH, NUM_PATCHES - 1 + SEQ)
    assert np.isfinite(final_embedding).all()

    print("KERNEL_OK")
</pallas_src>

<mosaic_0001>
module attributes {stable_mosaic.version = 11 : i64} {
  func.func @_fused_vision_projector_kernel(%arg0: i32, %arg1: memref<32x128xf32, #tpu.memory_space<vmem>>, %arg2: memref<128x128xbf16, #tpu.memory_space<vmem>>, %arg3: memref<1x128xf32, #tpu.memory_space<vmem>>, %arg4: memref<128x128xbf16, #tpu.memory_space<vmem>>, %arg5: memref<1x128xf32, #tpu.memory_space<vmem>>, %arg6: memref<128x128xbf16, #tpu.memory_space<vmem>>, %arg7: memref<1x128xf32, #tpu.memory_space<vmem>>, %arg8: memref<32x128xf32, #tpu.memory_space<vmem>>) attributes {dimension_semantics = [#tpu.dimension_semantics<parallel>], iteration_bounds = array<i64: 1>, scalar_prefetch = 0 : i64, scratch_operands = 0 : i64, tpu.core_type = #tpu.core_type<tc>, window_params = [{transform_indices = @transform_0, window_bounds = array<i64: 32, 128>}, {pipeline_mode = #tpu.pipeline_mode<synchronous>, transform_indices = @transform_1, window_bounds = array<i64: 128, 128>}, {pipeline_mode = #tpu.pipeline_mode<synchronous>, transform_indices = @transform_2, window_bounds = array<i64: 1, 128>}, {pipeline_mode = #tpu.pipeline_mode<synchronous>, transform_indices = @transform_3, window_bounds = array<i64: 128, 128>}, {pipeline_mode = #tpu.pipeline_mode<synchronous>, transform_indices = @transform_4, window_bounds = array<i64: 1, 128>}, {pipeline_mode = #tpu.pipeline_mode<synchronous>, transform_indices = @transform_5, window_bounds = array<i64: 128, 128>}, {pipeline_mode = #tpu.pipeline_mode<synchronous>, transform_indices = @transform_6, window_bounds = array<i64: 1, 128>}, {transform_indices = @transform_7, window_bounds = array<i64: 32, 128>}]} {
    %c0 = arith.constant 0 : index
    %c0_0 = arith.constant 0 : index
    %0 = vector.load %arg1[%c0, %c0_0] : memref<32x128xf32, #tpu.memory_space<vmem>>, vector<32x128xf32>
    %1 = arith.truncf %0 : vector<32x128xf32> to vector<32x128xbf16>
    %c0_1 = arith.constant 0 : index
    %c0_2 = arith.constant 0 : index
    %2 = vector.load %arg2[%c0_1, %c0_2] : memref<128x128xbf16, #tpu.memory_space<vmem>>, vector<128x128xbf16>
    %cst = arith.constant dense<0.000000e+00> : vector<32x128xf32>
    %3 = tpu.matmul %1, %2, %cst {dimension_numbers = #tpu.dot_dimension_numbers<[1], [0], [0], [1], [0, 0, 1, 1], [], []>} : vector<32x128xbf16>, vector<128x128xbf16>, vector<32x128xf32> -> vector<32x128xf32>
    %c0_3 = arith.constant 0 : index
    %c0_4 = arith.constant 0 : index
    %4 = vector.load %arg3[%c0_3, %c0_4] : memref<1x128xf32, #tpu.memory_space<vmem>>, vector<1x128xf32>
    %5 = vector.broadcast %4 : vector<1x128xf32> to vector<32x128xf32>
    %6 = arith.addf %3, %5 : vector<32x128xf32>
    %7 = arith.truncf %6 : vector<32x128xf32> to vector<32x128xbf16>
    %c0_5 = arith.constant 0 : index
    %c0_6 = arith.constant 0 : index
    %8 = vector.load %arg4[%c0_5, %c0_6] : memref<128x128xbf16, #tpu.memory_space<vmem>>, vector<128x128xbf16>
    %cst_7 = arith.constant dense<0.000000e+00> : vector<32x128xf32>
    %9 = tpu.matmul %7, %8, %cst_7 {dimension_numbers = #tpu.dot_dimension_numbers<[1], [0], [0], [1], [0, 0, 1, 1], [], []>} : vector<32x128xbf16>, vector<128x128xbf16>, vector<32x128xf32> -> vector<32x128xf32>
    %c0_8 = arith.constant 0 : index
    %c0_9 = arith.constant 0 : index
    %10 = vector.load %arg5[%c0_8, %c0_9] : memref<1x128xf32, #tpu.memory_space<vmem>>, vector<1x128xf32>
    %11 = vector.broadcast %10 : vector<1x128xf32> to vector<32x128xf32>
    %12 = arith.addf %9, %11 : vector<32x128xf32>
    %cst_10 = arith.constant 5.000000e-01 : f32
    %13 = vector.broadcast %cst_10 : f32 to vector<32x128xf32>
    %14 = arith.mulf %13, %12 : vector<32x128xf32>
    %cst_11 = arith.constant 0.707106769 : f32
    %15 = vector.broadcast %cst_11 : f32 to vector<32x128xf32>
    %16 = arith.mulf %12, %15 : vector<32x128xf32>
    %17 = math.erf %16 : vector<32x128xf32>
    %cst_12 = arith.constant 1.000000e+00 : f32
    %18 = vector.broadcast %cst_12 : f32 to vector<32x128xf32>
    %19 = arith.addf %18, %17 : vector<32x128xf32>
    %20 = arith.mulf %14, %19 : vector<32x128xf32>
    %21 = arith.truncf %20 : vector<32x128xf32> to vector<32x128xbf16>
    %c0_13 = arith.constant 0 : index
    %c0_14 = arith.constant 0 : index
    %22 = vector.load %arg6[%c0_13, %c0_14] : memref<128x128xbf16, #tpu.memory_space<vmem>>, vector<128x128xbf16>
    %cst_15 = arith.constant dense<0.000000e+00> : vector<32x128xf32>
    %23 = tpu.matmul %21, %22, %cst_15 {dimension_numbers = #tpu.dot_dimension_numbers<[1], [0], [0], [1], [0, 0, 1, 1], [], []>} : vector<32x128xbf16>, vector<128x128xbf16>, vector<32x128xf32> -> vector<32x128xf32>
    %c0_16 = arith.constant 0 : index
    %c0_17 = arith.constant 0 : index
    %24 = vector.load %arg7[%c0_16, %c0_17] : memref<1x128xf32, #tpu.memory_space<vmem>>, vector<1x128xf32>
    %25 = vector.broadcast %24 : vector<1x128xf32> to vector<32x128xf32>
    %26 = arith.addf %23, %25 : vector<32x128xf32>
    %c0_18 = arith.constant 0 : index
    %c0_19 = arith.constant 0 : index
    %27 = vector.load %arg8[%c0_18, %c0_19] : memref<32x128xf32, #tpu.memory_space<vmem>>, vector<32x128xf32>
    tpu.vector_store %arg8[%c0_18, %c0_19], %26 {strides = array<i32>} : memref<32x128xf32, #tpu.memory_space<vmem>>, vector<32x128xf32>,
    return
  }
  func.func @transform_0(%arg0: i32) -> (i32, i32) {
    %c0_i32 = arith.constant 0 : i32
    %c0_i32_0 = arith.constant 0 : i32
    return %arg0, %c0_i32 : i32, i32
  }
  func.func @transform_1(%arg0: i32) -> (i32, i32) {
    %c0_i32 = arith.constant 0 : i32
    %c0_i32_0 = arith.constant 0 : i32
    %c0_i32_1 = arith.constant 0 : i32
    return %c0_i32, %c0_i32_0 : i32, i32
  }
  func.func @transform_2(%arg0: i32) -> (i32, i32) {
    %c0_i32 = arith.constant 0 : i32
    %c0_i32_0 = arith.constant 0 : i32
    %c0_i32_1 = arith.constant 0 : i32
    return %c0_i32, %c0_i32_0 : i32, i32
  }
  func.func @transform_3(%arg0: i32) -> (i32, i32) {
    %c0_i32 = arith.constant 0 : i32
    %c0_i32_0 = arith.constant 0 : i32
    %c0_i32_1 = arith.constant 0 : i32
    return %c0_i32, %c0_i32_0 : i32, i32
  }
  func.func @transform_4(%arg0: i32) -> (i32, i32) {
    %c0_i32 = arith.constant 0 : i32
    %c0_i32_0 = arith.constant 0 : i32
    %c0_i32_1 = arith.constant 0 : i32
    return %c0_i32, %c0_i32_0 : i32, i32
  }
  func.func @transform_5(%arg0: i32) -> (i32, i32) {
    %c0_i32 = arith.constant 0 : i32
    %c0_i32_0 = arith.constant 0 : i32
    %c0_i32_1 = arith.constant 0 : i32
    return %c0_i32, %c0_i32_0 : i32, i32
  }
  func.func @transform_6(%arg0: i32) -> (i32, i32) {
    %c0_i32 = arith.constant 0 : i32
    %c0_i32_0 = arith.constant 0 : i32
    %c0_i32_1 = arith.constant 0 : i32
    return %c0_i32, %c0_i32_0 : i32, i32
  }
  func.func @transform_7(%arg0: i32) -> (i32, i32) {
    %c0_i32 = arith.constant 0 : i32
    %c0_i32_0 = arith.constant 0 : i32
    return %arg0, %c0_i32 : i32, i32
  }
}

</mosaic_0001>

<llo_original>
// kernel: _device_forward.1
$region0: #{_device_forward.1}
  #allocation0 [shape = 'u32[]', space=smem, size = 0x4, offset = 0x4, fixed_abs, tag = 'smem constant byte address 0x4 - core index']
  #allocation1 [shape = 'u32[72,128]{1,0:T(1,128)}', space=vmem, size = 0x9000, scoped, tag = 'internal scratch']
  %s0 = inlined_call_operand.vmem [shape: f32[32,128], index: 0, kind: input, shape index: {}]
  %s1 = inlined_call_operand.vmem [shape: bf16[128,128], index: 1, kind: input, shape index: {}]
  %s2 = inlined_call_operand.vmem [shape: f32[1,128], index: 2, kind: input, shape index: {}]
  %s3 = inlined_call_operand.vmem [shape: bf16[128,128], index: 3, kind: input, shape index: {}]
  %s4 = inlined_call_operand.vmem [shape: f32[1,128], index: 4, kind: input, shape index: {}]
  %s5 = inlined_call_operand.vmem [shape: bf16[128,128], index: 5, kind: input, shape index: {}]
  %s6 = inlined_call_operand.vmem [shape: f32[1,128], index: 6, kind: input, shape index: {}]
  %s7 = inlined_call_operand.hbm [shape: f32[32,128], index: 7, kind: output, shape index: {}]
  %s8 = sld [smem:[#allocation0]]
  $region38: #{_device_forward.1} parent=0
    _
  %s10 = ssub.s32 1, %s8
  %s11 = scalar_select 0, %s10, %s8
  $region1: #{_device_forward.1} parent=0
    #allocation2 [shape = 'u8[16384]{0}', space=vmem, size = 0x4000, scoped, tag = 'output window, operand 0, single buffered']
    #allocation3 [shape = 's32[1]{0}', space=sflag, size = 0x4, scoped, tag = 'scoped memory for _device_forward.1']
    %12 = vsyncpa [#allocation3], 0
    // Predicated region
    $region2: #{_device_forward.1} parent=1 // pred_check
      _
    $region3: #{_device_forward.1} parent=1 // pred_check_branch
      %14 = sbr.rel (0) target = $region5
    $region4: #{_device_forward.1} parent=1 // pred_region
      _
    $region5: #{_device_forward.1} parent=1 // pred_fallthru
      _
    // Predicated region
    $region6: #{_device_forward.1} parent=1 // pred_check
      _
    $region7: #{_device_forward.1} parent=1 // pred_check_branch
      %16 = sbr.rel (0) target = $region9
    $region8: #{_device_forward.1} parent=1 // pred_region
      _
    $region9: #{_device_forward.1} parent=1 // pred_fallthru
      _
    // Predicated region
    $region10: #{_device_forward.1} parent=1 // pred_check
      _
    $region11: #{_device_forward.1} parent=1 // pred_check_branch
      %18 = sbr.rel (0) target = $region13
    $region12: #{_device_forward.1} parent=1 // pred_region
      _
    $region13: #{_device_forward.1} parent=1 // pred_fallthru
      _
    // Predicated region
    $region14: #{_device_forward.1} parent=1 // pred_check
      _
    $region15: #{_device_forward.1} parent=1 // pred_check_branch
      %20 = sbr.rel (0) target = $region17
    $region16: #{_device_forward.1} parent=1 // pred_region
      _
    $region17: #{_device_forward.1} parent=1 // pred_fallthru
      _
    // Predicated region
    $region18: #{_device_forward.1} parent=1 // pred_check
      _
    $region19: #{_device_forward.1} parent=1 // pred_check_branch
      %22 = sbr.rel (0) target = $region21
    $region20: #{_device_forward.1} parent=1 // pred_region
      _
    $region21: #{_device_forward.1} parent=1 // pred_fallthru
      _
    // Predicated region
    $region22: #{_device_forward.1} parent=1 // pred_check
      _
    $region23: #{_device_forward.1} parent=1 // pred_check_branch
      %24 = sbr.rel (0) target = $region25
    $region24: #{_device_forward.1} parent=1 // pred_region
      _
    $region25: #{_device_forward.1} parent=1 // pred_fallthru
      _
    // Predicated region
    $region26: #{_device_forward.1} parent=1 // pred_check
      _
    $region27: #{_device_forward.1} parent=1 // pred_check_branch
      %26 = sbr.rel (0) target = $region29
    $region28: #{_device_forward.1} parent=1 // pred_region
      _
    $region29: #{_device_forward.1} parent=1 // pred_fallthru
      _
    %v27 = vld [vmem:[%s0] sm:$0xff]
    %v28 = vld [vmem:[%s0 + $0x8] sm:$0xff]
    %v29 = vld [vmem:[%s0 + $0x10] sm:$0xff]
    %v30 = vld [vmem:[%s0 + $0x18] sm:$0xff]
    %v31 = vpack.c.bf16 %v28, %v27
    %v32 = vpack.c.bf16 %v30, %v29
    %v33 = vld [vmem:[%s1] sm:$0xf]
    %v34 = vld [vmem:[%s1 + $0x4] sm:$0xf]
    %v35 = vld [vmem:[%s1 + $0x8] sm:$0xf]
    %v36 = vld [vmem:[%s1 + $0xc] sm:$0xf]
    %v37 = vld [vmem:[%s1 + $0x10] sm:$0xf]
    %v38 = vld [vmem:[%s1 + $0x14] sm:$0xf]
    %v39 = vld [vmem:[%s1 + $0x18] sm:$0xf]
    %v40 = vld [vmem:[%s1 + $0x1c] sm:$0xf]
    %v41 = vld [vmem:[%s1 + $0x20] sm:$0xf]
    %v42 = vld [vmem:[%s1 + $0x24] sm:$0xf]
    %v43 = vld [vmem:[%s1 + $0x28] sm:$0xf]
    %v44 = vld [vmem:[%s1 + $0x2c] sm:$0xf]
    %v45 = vld [vmem:[%s1 + $0x30] sm:$0xf]
    %v46 = vld [vmem:[%s1 + $0x34] sm:$0xf]
    %v47 = vld [vmem:[%s1 + $0x38] sm:$0xf]
    %v48 = vld [vmem:[%s1 + $0x3c] sm:$0xf]
    %v49 = vld [vmem:[%s2] sm:$0x1]
    %v51 = vperm.slane %v49, 0
    %v69 = vunpack.c.l.b16 %v33
    %v70 = vunpack.c.l.b16 %v34
    %v71 = vunpack.c.l.b16 %v35
    %v72 = vunpack.c.l.b16 %v36
    %v73 = vunpack.c.l.b16 %v37
    %v74 = vunpack.c.l.b16 %v38
    %v75 = vunpack.c.l.b16 %v39
    %v76 = vunpack.c.l.b16 %v40
    %v77 = vunpack.c.l.b16 %v41
    %v78 = vunpack.c.l.b16 %v42
    %v79 = vunpack.c.l.b16 %v43
    %v80 = vunpack.c.l.b16 %v44
    %v81 = vunpack.c.l.b16 %v45
    %v82 = vunpack.c.l.b16 %v46
    %v83 = vunpack.c.l.b16 %v47
    %v84 = vunpack.c.l.b16 %v48
    %v85 = vpack.c.b16 %v70, %v69
    %v86 = vpack.c.b16 %v72, %v71
    %v87 = vpack.c.b16 %v74, %v73
    %v88 = vpack.c.b16 %v76, %v75
    %v89 = vpack.c.b16 %v78, %v77
    %v90 = vpack.c.b16 %v80, %v79
    %v91 = vpack.c.b16 %v82, %v81
    %v92 = vpack.c.b16 %v84, %v83
    %101 = vmatpush.bf16.msra.mxu0 %v92
    %102 = vmatpush.bf16.msra.mxu0 %v91
    %103 = vmatpush.bf16.msra.mxu0 %v90
    %104 = vmatpush.bf16.msra.mxu0 %v89
    %105 = vmatpush.bf16.msra.mxu0 %v88
    %106 = vmatpush.bf16.msra.mxu0 %v87
    %107 = vmatpush.bf16.msra.mxu0 %v86
    %108 = vmatpush.bf16.msra.mxu0 %v85
    %109 = vmatmul.bf16.gmra.mxu0 %v31
    %v110 = vpop.f32.mrf.mxu0
    %v111 = vadd.f32 %v51, %v110
    %v112 = vpop.f32.mrf.mxu0
    %v113 = vadd.f32 %v51, %v112
    %114 = vmatmul.bf16.gmra.mxu0 %v32
    %v115 = vpop.f32.mrf.mxu0
    %v116 = vadd.f32 %v51, %v115
    %v117 = vpop.f32.mrf.mxu0
    %v118 = vadd.f32 %v51, %v117
    %119 = vdwg.mxu0
    %v120 = vpack.c.bf16 %v113, %v111
    %v121 = vpack.c.bf16 %v118, %v116
    %v122 = vld [vmem:[%s3] sm:$0xf]
    %v123 = vld [vmem:[%s3 + $0x4] sm:$0xf]
    %v124 = vld [vmem:[%s3 + $0x8] sm:$0xf]
    %v125 = vld [vmem:[%s3 + $0xc] sm:$0xf]
    %v126 = vld [vmem:[%s3 + $0x10] sm:$0xf]
    %v127 = vld [vmem:[%s3 + $0x14] sm:$0xf]
    %v128 = vld [vmem:[%s3 + $0x18] sm:$0xf]
    %v129 = vld [vmem:[%s3 + $0x1c] sm:$0xf]
    %v130 = vld [vmem:[%s3 + $0x20] sm:$0xf]
    %v131 = vld [vmem:[%s3 + $0x24] sm:$0xf]
    %v132 = vld [vmem:[%s3 + $0x28] sm:$0xf]
    %v133 = vld [vmem:[%s3 + $0x2c] sm:$0xf]
    %v134 = vld [vmem:[%s3 + $0x30] sm:$0xf]
    %v135 = vld [vmem:[%s3 + $0x34] sm:$0xf]
    %v136 = vld [vmem:[%s3 + $0x38] sm:$0xf]
    %v137 = vld [vmem:[%s3 + $0x3c] sm:$0xf]
    %v138 = vld [vmem:[%s4] sm:$0x1]
    %v140 = vperm.slane %v138, 0
    %v158 = vunpack.c.l.b16 %v122
    %v159 = vunpack.c.l.b16 %v123
    %v160 = vunpack.c.l.b16 %v124
    %v161 = vunpack.c.l.b16 %v125
    %v162 = vunpack.c.l.b16 %v126
    %v163 = vunpack.c.l.b16 %v127
    %v164 = vunpack.c.l.b16 %v128
    %v165 = vunpack.c.l.b16 %v129
    %v166 = vunpack.c.l.b16 %v130
    %v167 = vunpack.c.l.b16 %v131
    %v168 = vunpack.c.l.b16 %v132
    %v169 = vunpack.c.l.b16 %v133
    %v170 = vunpack.c.l.b16 %v134
    %v171 = vunpack.c.l.b16 %v135
    %v172 = vunpack.c.l.b16 %v136
    %v173 = vunpack.c.l.b16 %v137
    %v174 = vpack.c.b16 %v159, %v158
    %v175 = vpack.c.b16 %v161, %v160
    %v176 = vpack.c.b16 %v163, %v162
    %v177 = vpack.c.b16 %v165, %v164
    %v178 = vpack.c.b16 %v167, %v166
    %v179 = vpack.c.b16 %v169, %v168
    %v180 = vpack.c.b16 %v171, %v170
    %v181 = vpack.c.b16 %v173, %v172
    %190 = vmatpush.bf16.msra.mxu0 %v181
    %191 = vmatpush.bf16.msra.mxu0 %v180
    %192 = vmatpush.bf16.msra.mxu0 %v179
    %193 = vmatpush.bf16.msra.mxu0 %v178
    %194 = vmatpush.bf16.msra.mxu0 %v177
    %195 = vmatpush.bf16.msra.mxu0 %v176
    %196 = vmatpush.bf16.msra.mxu0 %v175
    %197 = vmatpush.bf16.msra.mxu0 %v174
    %198 = vmatmul.bf16.gmra.mxu0 %v120
    %v199 = vpop.f32.mrf.mxu0
    %v200 = vadd.f32 %v140, %v199
    %v201 = vpop.f32.mrf.mxu0
    %v202 = vadd.f32 %v140, %v201
    %203 = vmatmul.bf16.gmra.mxu0 %v121
    %v204 = vpop.f32.mrf.mxu0
    %v205 = vadd.f32 %v140, %v204
    %v206 = vpop.f32.mrf.mxu0
    %v207 = vadd.f32 %v140, %v206
    %208 = vdwg.mxu0
    %v209 = vmul.f32 %v200, 0.5
    %v210 = vmul.f32 %v202, 0.5
    %v211 = vmul.f32 %v205, 0.5
    %v212 = vmul.f32 %v207, 0.5
    %v213 = vmul.f32 %v200, 0.70710677
    %v214 = vmul.f32 %v202, 0.70710677
    %v215 = vmul.f32 %v205, 0.70710677
    %v216 = vmul.f32 %v207, 0.70710677
    %v217 = vmul.f32 %v213, %v213
    %v218 = vmin.f32 16.0, %v217
    %v219 = vmul.f32 %v218, 2.1237322e-06
    %v220 = vadd.f32 %v219, 0.00028619796
    %v221 = vmul.f32 %v218, %v220
    %v222 = vadd.f32 %v221, 0.0036580483
    %v223 = vmul.f32 %v218, %v222
    %v224 = vadd.f32 %v223, 0.05243302
    %v225 = vmul.f32 %v218, %v224
    %v226 = vadd.f32 %v225, 0.18741608
    %v227 = vmul.f32 %v218, %v226
    %v228 = vadd.f32 %v227, 1.1283791
    %v229 = vmul.f32 %v213, %v228
    %v230 = vmul.f32 %v218, 3.8918573e-05
    %v231 = vadd.f32 %v230, 0.001143296
    %v232 = vmul.f32 %v218, %v231
    %v233 = vadd.f32 %v232, 0.014752088
    %v234 = vmul.f32 %v218, %v233
    %v235 = vadd.f32 %v234, 0.112945676
    %v236 = vmul.f32 %v218, %v235
    %v237 = vadd.f32 %v236, 0.4994258
    %v238 = vmul.f32 %v218, %v237
    %v239 = vadd.f32 %v238, 1.0
    %v240 = vrcp.pop %v239
    %v241 = vmul.f32 %v239, %v240
    %v242 = vsub.f32 1.0, %v241
    %v243 = vmul.f32 %v240, %v242
    %v244 = vadd.f32 %v240, %v243
    %vm245 = vweird.f32 %v239
    %vm246 = vweird.f32 %v240
    %vm247 = vmor %vm245, %vm246
    %v248 = vsel %vm247, %v240, %v244
    %v249 = vand.u32 2147483647, %v239
    %vm250 = vcmp.eq.f32.partialorder %v249, 8.507059e+37
    %v251 = vand.u32 %v239, 2147483648
    %v252 = vor.u32 1.1754944e-38, %v251
    %v253 = vsel %vm250, %v252, %v248
    %v254 = vmul.f32 %v229, %v253
    %v255 = vmin.f32 %v254, 1.0
    %v256 = vmax.f32 %v255, -1.0
    %v257 = vmul.f32 %v214, %v214
    %v258 = vmin.f32 16.0, %v257
    %v259 = vmul.f32 %v258, 2.1237322e-06
    %v260 = vadd.f32 %v259, 0.00028619796
    %v261 = vmul.f32 %v258, %v260
    %v262 = vadd.f32 %v261, 0.0036580483
    %v263 = vmul.f32 %v258, %v262
    %v264 = vadd.f32 %v263, 0.05243302
    %v265 = vmul.f32 %v258, %v264
    %v266 = vadd.f32 %v265, 0.18741608
    %v267 = vmul.f32 %v258, %v266
    %v268 = vadd.f32 %v267, 1.1283791
    %v269 = vmul.f32 %v214, %v268
    %v270 = vmul.f32 %v258, 3.8918573e-05
    %v271 = vadd.f32 %v270, 0.001143296
    %v272 = vmul.f32 %v258, %v271
    %v273 = vadd.f32 %v272, 0.014752088
    %v274 = vmul.f32 %v258, %v273
    %v275 = vadd.f32 %v274, 0.112945676
    %v276 = vmul.f32 %v258, %v275
    %v277 = vadd.f32 %v276, 0.4994258
    %v278 = vmul.f32 %v258, %v277
    %v279 = vadd.f32 %v278, 1.0
    %v280 = vrcp.pop %v279
    %v281 = vmul.f32 %v279, %v280
    %v282 = vsub.f32 1.0, %v281
    %v283 = vmul.f32 %v280, %v282
    %v284 = vadd.f32 %v280, %v283
    %vm285 = vweird.f32 %v279
    %vm286 = vweird.f32 %v280
    %vm287 = vmor %vm285, %vm286
    %v288 = vsel %vm287, %v280, %v284
    %v289 = vand.u32 2147483647, %v279
    %vm290 = vcmp.eq.f32.partialorder %v289, 8.507059e+37
    %v291 = vand.u32 %v279, 2147483648
    %v292 = vor.u32 1.1754944e-38, %v291
    %v293 = vsel %vm290, %v292, %v288
    %v294 = vmul.f32 %v269, %v293
    %v295 = vmin.f32 %v294, 1.0
    %v296 = vmax.f32 %v295, -1.0
    %v297 = vmul.f32 %v215, %v215
    %v298 = vmin.f32 16.0, %v297
    %v299 = vmul.f32 %v298, 2.1237322e-06
    %v300 = vadd.f32 %v299, 0.00028619796
    %v301 = vmul.f32 %v298, %v300
    %v302 = vadd.f32 %v301, 0.0036580483
    %v303 = vmul.f32 %v298, %v302
    %v304 = vadd.f32 %v303, 0.05243302
    %v305 = vmul.f32 %v298, %v304
    %v306 = vadd.f32 %v305, 0.18741608
    %v307 = vmul.f32 %v298, %v306
    %v308 = vadd.f32 %v307, 1.1283791
    %v309 = vmul.f32 %v215, %v308
    %v310 = vmul.f32 %v298, 3.8918573e-05
    %v311 = vadd.f32 %v310, 0.001143296
    %v312 = vmul.f32 %v298, %v311
    %v313 = vadd.f32 %v312, 0.014752088
    %v314 = vmul.f32 %v298, %v313
    %v315 = vadd.f32 %v314, 0.112945676
    %v316 = vmul.f32 %v298, %v315
    %v317 = vadd.f32 %v316, 0.4994258
    %v318 = vmul.f32 %v298, %v317
    %v319 = vadd.f32 %v318, 1.0
    %v320 = vrcp.pop %v319
    %v321 = vmul.f32 %v319, %v320
    %v322 = vsub.f32 1.0, %v321
    %v323 = vmul.f32 %v320, %v322
    %v324 = vadd.f32 %v320, %v323
    %vm325 = vweird.f32 %v319
    %vm326 = vweird.f32 %v320
    %vm327 = vmor %vm325, %vm326
    %v328 = vsel %vm327, %v320, %v324
    %v329 = vand.u32 2147483647, %v319
    %vm330 = vcmp.eq.f32.partialorder %v329, 8.507059e+37
    %v331 = vand.u32 %v319, 2147483648
    %v332 = vor.u32 1.1754944e-38, %v331
    %v333 = vsel %vm330, %v332, %v328
    %v334 = vmul.f32 %v309, %v333
    %v335 = vmin.f32 %v334, 1.0
    %v336 = vmax.f32 %v335, -1.0
    %v337 = vmul.f32 %v216, %v216
    %v338 = vmin.f32 16.0, %v337
    %v339 = vmul.f32 %v338, 2.1237322e-06
    %v340 = vadd.f32 %v339, 0.00028619796
    %v341 = vmul.f32 %v338, %v340
    %v342 = vadd.f32 %v341, 0.0036580483
    %v343 = vmul.f32 %v338, %v342
    %v344 = vadd.f32 %v343, 0.05243302
    %v345 = vmul.f32 %v338, %v344
    %v346 = vadd.f32 %v345, 0.18741608
    %v347 = vmul.f32 %v338, %v346
    %v348 = vadd.f32 %v347, 1.1283791
    %v349 = vmul.f32 %v216, %v348
    %v350 = vmul.f32 %v338, 3.8918573e-05
    %v351 = vadd.f32 %v350, 0.001143296
    %v352 = vmul.f32 %v338, %v351
    %v353 = vadd.f32 %v352, 0.014752088
    %v354 = vmul.f32 %v338, %v353
    %v355 = vadd.f32 %v354, 0.112945676
    %v356 = vmul.f32 %v338, %v355
    %v357 = vadd.f32 %v356, 0.4994258
    %v358 = vmul.f32 %v338, %v357
    %v359 = vadd.f32 %v358, 1.0
    %v360 = vrcp.pop %v359
    %v361 = vmul.f32 %v359, %v360
    %v362 = vsub.f32 1.0, %v361
    %v363 = vmul.f32 %v360, %v362
    %v364 = vadd.f32 %v360, %v363
    %vm365 = vweird.f32 %v359
    %vm366 = vweird.f32 %v360
    %vm367 = vmor %vm365, %vm366
    %v368 = vsel %vm367, %v360, %v364
    %v369 = vand.u32 2147483647, %v359
    %vm370 = vcmp.eq.f32.partialorder %v369, 8.507059e+37
    %v371 = vand.u32 %v359, 2147483648
    %v372 = vor.u32 1.1754944e-38, %v371
    %v373 = vsel %vm370, %v372, %v368
    %v374 = vmul.f32 %v349, %v373
    %v375 = vmin.f32 %v374, 1.0
    %v376 = vmax.f32 %v375, -1.0
    %v377 = vadd.f32 %v256, 1.0
    %v378 = vadd.f32 %v296, 1.0
    %v379 = vadd.f32 %v336, 1.0
    %v380 = vadd.f32 %v376, 1.0
    %v381 = vmul.f32 %v209, %v377
    %v382 = vmul.f32 %v210, %v378
    %v383 = vmul.f32 %v211, %v379
    %v384 = vmul.f32 %v212, %v380
    %v385 = vpack.c.bf16 %v382, %v381
    %v386 = vpack.c.bf16 %v384, %v383
    %v387 = vld [vmem:[%s5] sm:$0xf]
    %v388 = vld [vmem:[%s5 + $0x4] sm:$0xf]
    %v389 = vld [vmem:[%s5 + $0x8] sm:$0xf]
    %v390 = vld [vmem:[%s5 + $0xc] sm:$0xf]
    %v391 = vld [vmem:[%s5 + $0x10] sm:$0xf]
    %v392 = vld [vmem:[%s5 + $0x14] sm:$0xf]
    %v393 = vld [vmem:[%s5 + $0x18] sm:$0xf]
    %v394 = vld [vmem:[%s5 + $0x1c] sm:$0xf]
    %v395 = vld [vmem:[%s5 + $0x20] sm:$0xf]
    %v396 = vld [vmem:[%s5 + $0x24] sm:$0xf]
    %v397 = vld [vmem:[%s5 + $0x28] sm:$0xf]
    %v398 = vld [vmem:[%s5 + $0x2c] sm:$0xf]
    %v399 = vld [vmem:[%s5 + $0x30] sm:$0xf]
    %v400 = vld [vmem:[%s5 + $0x34] sm:$0xf]
    %v401 = vld [vmem:[%s5 + $0x38] sm:$0xf]
    %v402 = vld [vmem:[%s5 + $0x3c] sm:$0xf]
    %v403 = vld [vmem:[%s6] sm:$0x1]
    %v405 = vperm.slane %v403, 0
    %v423 = vunpack.c.l.b16 %v387
    %v424 = vunpack.c.l.b16 %v388
    %v425 = vunpack.c.l.b16 %v389
    %v426 = vunpack.c.l.b16 %v390
    %v427 = vunpack.c.l.b16 %v391
    %v428 = vunpack.c.l.b16 %v392
    %v429 = vunpack.c.l.b16 %v393
    %v430 = vunpack.c.l.b16 %v394
    %v431 = vunpack.c.l.b16 %v395
    %v432 = vunpack.c.l.b16 %v396
    %v433 = vunpack.c.l.b16 %v397
    %v434 = vunpack.c.l.b16 %v398
    %v435 = vunpack.c.l.b16 %v399
    %v436 = vunpack.c.l.b16 %v400
    %v437 = vunpack.c.l.b16 %v401
    %v438 = vunpack.c.l.b16 %v402
    %v439 = vpack.c.b16 %v424, %v423
    %v440 = vpack.c.b16 %v426, %v425
    %v441 = vpack.c.b16 %v428, %v427
    %v442 = vpack.c.b16 %v430, %v429
    %v443 = vpack.c.b16 %v432, %v431
    %v444 = vpack.c.b16 %v434, %v433
    %v445 = vpack.c.b16 %v436, %v435
    %v446 = vpack.c.b16 %v438, %v437
    %455 = vmatpush.bf16.msra.mxu0 %v446
    %456 = vmatpush.bf16.msra.mxu0 %v445
    %457 = vmatpush.bf16.msra.mxu0 %v444
    %458 = vmatpush.bf16.msra.mxu0 %v443
    %459 = vmatpush.bf16.msra.mxu0 %v442
    %460 = vmatpush.bf16.msra.mxu0 %v441
    %461 = vmatpush.bf16.msra.mxu0 %v440
    %462 = vmatpush.bf16.msra.mxu0 %v439
    %463 = vmatmul.bf16.gmra.mxu0 %v385
    %v464 = vpop.f32.mrf.mxu0
    %v465 = vadd.f32 %v405, %v464
    %v466 = vpop.f32.mrf.mxu0
    %v467 = vadd.f32 %v405, %v466
    %468 = vmatmul.bf16.gmra.mxu0 %v386
    %v469 = vpop.f32.mrf.mxu0
    %v470 = vadd.f32 %v405, %v469
    %v471 = vpop.f32.mrf.mxu0
    %v472 = vadd.f32 %v405, %v471
    %473 = vdwg.mxu0
    %474 = vst [vmem:[#allocation2] sm:$0xff] %v465
    %475 = vst [vmem:[#allocation2 + $0x8] sm:$0xff] %v467
    %476 = vst [vmem:[#allocation2 + $0x10] sm:$0xff] %v470
    %477 = vst [vmem:[#allocation2 + $0x18] sm:$0xff] %v472
    // Predicated region
    $region30: #{_device_forward.1} parent=1 // pred_check
      _
    $region31: #{_device_forward.1} parent=1 // pred_check_branch
      %479 = sbr.rel (0) target = $region33
    $region32: #{_device_forward.1} parent=1 // pred_region
      %481 = vsyncadd [#allocation3], 0
      %s482 = sshll.u32 [#allocation2], 4
      %s483 = int_to_ptr.vmem [resolvable:$true] %s482
      %s484 = sshll.u32 %s7, 4
      %s485 = int_to_ptr.hbm [resolvable:$true] %s484
      %490 = dma.vmem_to_hbm [thread:$0]  %s483, 512, %s485, [#allocation3], 128, 128, 8
    $region33: #{_device_forward.1} parent=1 // pred_fallthru
      _
    // Predicated region
    $region34: #{_device_forward.1} parent=1 // pred_check
      _
    $region35: #{_device_forward.1} parent=1 // pred_check_branch
      %492 = sbr.rel (0) target = $region37
    $region36: #{_device_forward.1} parent=1 // pred_region
      %494 = dma.done [#allocation3], 512
    $region37: #{_device_forward.1} parent=1 // pred_fallthru
      _
    %495 = vsyncpa [#allocation3], 1

</llo_original>
